<compile_context>
chip_gen: v7x
topology: tpu7x:2x2x1
jax: 0.10.0
libtpu: 0.0.40
codegen_flags: <defaults>
</compile_context>

<pallas_src>
import functools

import jax
import jax.numpy as jnp
from jax.experimental import pallas as pl
from jax.experimental.pallas import tpu as pltpu


def _cdiv(a, b):
    return (a + b - 1) // b


def _round_up(x, m):
    return _cdiv(x, m) * m


# ------------------------------ Fused kernel ------------------------------ #
def _fused_mlp_kernel(*refs, num_hidden, has_out, compute_dtype):
    """refs = (x_ref, w0, b0, w1, b1, ..., [w_out, b_out], o_ref).

    All weights are block-diagonal (P packed batch rows per kernel row), so the
    body is just a chain of dots: every intermediate activation stays in
    vregs/VMEM and only one kernel launch is paid.
    """
    x_ref = refs[0]
    o_ref = refs[-1]
    p = refs[1:-1]

    h = x_ref[...]                                  # (rows, P*K0), compute_dtype
    idx = 0
    for _ in range(num_hidden):
        w = p[idx][...]                             # (P*K, P*N) block-diagonal
        b = p[idx + 1][...]                         # (1, P*N) f32
        idx += 2
        h = jnp.dot(h, w, preferred_element_type=jnp.float32) + b
        h = jnp.maximum(h, 0.0)                     # ReLU; Dropout = identity (eval)
        h = h.astype(compute_dtype)                 # matmul operand dtype only
    if has_out:
        w = p[idx][...]                             # (P*K, P) block-diag head
        b = p[idx + 1][...]                         # (1, 1) f32, broadcasts
        h = jnp.dot(h, w, preferred_element_type=jnp.float32) + b
    o_ref[...] = h.astype(o_ref.dtype)


# ------------------------------- Wrapper ----------------------------------- #
def mlp_forward_pallas(x, params, out_params, *,
                       compute_dtype=jnp.float32, max_tile_m=4096):
    """x: (M, K0); params: list of (w:(K,N), b:(1,N)); out_params: ((K,1),(1,1))|None."""
    M, K0 = x.shape
    out_dtype = x.dtype
    num_hidden = len(params)
    has_out = out_params is not None
    n_last = params[-1][0].shape[1] if num_hidden else K0

    # ---- Lane-pack factor P: largest {8,4,2,1} keeping every packed feature
    #      dim within one 256-wide MXU pass. ----
    max_dim = max([K0] + [w.shape[1] for (w, _) in params])
    P = 1
    for cand in (8, 4, 2):
        if cand * max_dim <= 256:
            P = cand
            break

    # ---- Batch tiling: fewest exactly-fitting tiles; even #steps when there
    #      is enough work so v7x's 2 TCs get balanced shards. ----
    g = 8 * P                                    # packed rows per tile must be %8
    n_steps = _cdiv(_round_up(M, g), max_tile_m)
    if M >= 1024:
        n_steps = max(n_steps, 2)
    if n_steps > 1 and (n_steps % 2):
        n_steps += 1
    tile_m = _round_up(_cdiv(M, n_steps), g)
    m_pad = n_steps * tile_m
    rows_tile = tile_m // P
    rows_total = m_pad // P

    # ---- Host-side packing: x (M,K0) -> (m_pad/P, P*K0); weights -> kron(I_P, W). ----
    x_pad = jnp.pad(x, ((0, m_pad - M), (0, 0))) if m_pad != M else x
    x_packed = x_pad.reshape(rows_total, P * K0).astype(compute_dtype)

    eye_p = jnp.eye(P, dtype=jnp.float32)
    flat_params = []
    for (w, b) in params:
        flat_params.append(jnp.kron(eye_p, w).astype(compute_dtype))   # (P*K, P*N)
        flat_params.append(jnp.tile(b, (1, P)).astype(jnp.float32))    # (1, P*N)
    if has_out:
        w_out, b_out = out_params
        flat_params.append(jnp.kron(eye_p, w_out).astype(compute_dtype))  # (P*K, P)
        flat_params.append(b_out.astype(jnp.float32))                     # (1, 1)
        f_out, out_cols = P, 1
    else:
        f_out, out_cols = P * n_last, n_last

    # ---- Specs: x/out tiles walk the batch axis; params pinned (const map). ----
    in_specs = [pl.BlockSpec((rows_tile, P * K0), lambda i: (i, 0))]
    param_bytes = 0
    for prm in flat_params:
        in_specs.append(pl.BlockSpec(prm.shape, lambda i: (0, 0)))
        param_bytes += prm.size * prm.dtype.itemsize
    out_specs = pl.BlockSpec((rows_tile, f_out), lambda i: (i, 0))

    # ---- Advisory cost estimate (MACs actually issued on the packed shapes). ----
    flops, k = 0, P * K0
    for (w, _) in params:
        n = P * w.shape[1]
        flops += 2 * rows_total * k * n
        k = n
    if has_out:
        flops += 2 * rows_total * k * P
    bytes_accessed = (x_packed.size * x_packed.dtype.itemsize + param_bytes
                      + rows_total * f_out * jnp.dtype(out_dtype).itemsize)

    # ---- VMEM budget (tiny here; never the thing that should shrink tile_m). ----
    itm = jnp.dtype(compute_dtype).itemsize
    tile_bytes = rows_tile * (P * K0 * itm + f_out * jnp.dtype(out_dtype).itemsize)
    vmem_budget = 2 * tile_bytes + 2 * param_bytes + (4 << 20)
    vmem_limit = int(min(max(vmem_budget, 16 << 20), 48 << 20))

    kernel = functools.partial(_fused_mlp_kernel, num_hidden=num_hidden,
                               has_out=has_out, compute_dtype=compute_dtype)

    y = pl.pallas_call(
        kernel,
        out_shape=jax.ShapeDtypeStruct((rows_total, f_out), out_dtype),
        grid=(n_steps,),
        in_specs=in_specs,
        out_specs=out_specs,
        compiler_params=pltpu.CompilerParams(
            dimension_semantics=("parallel",),
            vmem_limit_bytes=vmem_limit,
        ),
        cost_estimate=pl.CostEstimate(flops=flops, transcendentals=0,
                                      bytes_accessed=bytes_accessed),
    )(x_packed, *flat_params)

    # Un-pack: row r of the packed output holds P consecutive batch rows.
    return y.reshape(m_pad, out_cols)[:M]


# --------------------------- Params & reference ---------------------------- #
def init_mlp_params(key, input_dim, embed_dims, output_layer):
    """Deterministic init (Kaiming-ish uniform like torch Linear); weights (in, out)."""
    params = []
    in_dim = input_dim
    for embed_dim in embed_dims:
        key, kw, kb = jax.random.split(key, 3)
        bound = 1.0 / jnp.sqrt(in_dim)
        w = jax.random.uniform(kw, (in_dim, embed_dim), jnp.float32, -bound, bound)
        b = jax.random.uniform(kb, (1, embed_dim), jnp.float32, -bound, bound)
        params.append((w, b))
        in_dim = embed_dim
    out_params = None
    if output_layer:
        key, kw, kb = jax.random.split(key, 3)
        bound = 1.0 / jnp.sqrt(in_dim)
        w = jax.random.uniform(kw, (in_dim, 1), jnp.float32, -bound, bound)
        b = jax.random.uniform(kb, (1, 1), jnp.float32, -bound, bound)
        out_params = (w, b)
    return params, out_params


def mlp_forward_ref(x, params, out_params):
    hp = jax.lax.Precision.HIGHEST
    for (w, b) in params:
        x = jnp.maximum(jnp.dot(x, w, precision=hp) + b, 0.0)
    if out_params is not None:
        w, b = out_params
        x = jnp.dot(x, w, precision=hp) + b
    return x


# --------------------------------- Main ------------------------------------ #
if __name__ == "__main__":
    key = jax.random.PRNGKey(0)

    input_dim = 32
    embed_dims = (64, 32)

    k_p, k_x, k_x2 = jax.random.split(key, 3)
    params, out_params = init_mlp_params(k_p, input_dim, embed_dims, True)

    # Small case from the spec (batch=2): one tile, P=4 packing -> 8 packed rows.
    batch = 2
    x = jax.random.normal(k_x, (batch, input_dim), jnp.float32)
    y = jax.block_until_ready(mlp_forward_pallas(x, params, out_params))
    y_ref = mlp_forward_ref(x, params, out_params)
    assert y.shape == (batch, 1), y.shape
    assert jnp.allclose(y, y_ref, atol=1e-4, rtol=1e-4), (y, y_ref)

    # Larger case: exercises the even 2-step grid (v7x TC balance) + small tail pad.
    batch2 = 1040
    x2 = jax.random.normal(k_x2, (batch2, input_dim), jnp.float32)
    y2 = jax.block_until_ready(mlp_forward_pallas(x2, params, out_params))
    y2_ref = mlp_forward_ref(x2, params, out_params)
    assert y2.shape == (batch2, 1), y2.shape
    assert jnp.allclose(y2, y2_ref, atol=1e-4, rtol=1e-4)

    # No-output-layer configuration (output = last hidden activation).
    params_nh, _ = init_mlp_params(k_p, input_dim, embed_dims, False)
    y3 = jax.block_until_ready(mlp_forward_pallas(x, params_nh, None))
    y3_ref = mlp_forward_ref(x, params_nh, None)
    assert y3.shape == (batch, embed_dims[-1]), y3.shape
    assert jnp.allclose(y3, y3_ref, atol=1e-4, rtol=1e-4)

    # bf16 MXU operands (v6e/v7x option), f32 accumulation -> loose tolerance.
    y4 = jax.block_until_ready(
        mlp_forward_pallas(x2, params, out_params, compute_dtype=jnp.bfloat16))
    assert y4.shape == (batch2, 1), y4.shape
    assert jnp.allclose(y4, y2_ref, atol=1e-1, rtol=1e-1)

    print("KERNEL_OK")
</pallas_src>

<mosaic_0001>
module attributes {stable_mosaic.version = 11 : i64} {
  func.func @_fused_mlp_kernel(%arg0: i32, %arg1: memref<8x128xf32, #tpu.memory_space<vmem>>, %arg2: memref<128x256xf32, #tpu.memory_space<vmem>>, %arg3: memref<1x256xf32, #tpu.memory_space<vmem>>, %arg4: memref<256x128xf32, #tpu.memory_space<vmem>>, %arg5: memref<1x128xf32, #tpu.memory_space<vmem>>, %arg6: memref<128x4xf32, #tpu.memory_space<vmem>>, %arg7: memref<1x1xf32, #tpu.memory_space<vmem>>, %arg8: memref<8x4xf32, #tpu.memory_space<vmem>>) attributes {dimension_semantics = [#tpu.dimension_semantics<parallel>], iteration_bounds = array<i64: 1>, scalar_prefetch = 0 : i64, scratch_operands = 0 : i64, tpu.core_type = #tpu.core_type<tc>, window_params = [{transform_indices = @transform_0, window_bounds = array<i64: 8, 128>}, {pipeline_mode = #tpu.pipeline_mode<synchronous>, transform_indices = @transform_1, window_bounds = array<i64: 128, 256>}, {pipeline_mode = #tpu.pipeline_mode<synchronous>, transform_indices = @transform_2, window_bounds = array<i64: 1, 256>}, {pipeline_mode = #tpu.pipeline_mode<synchronous>, transform_indices = @transform_3, window_bounds = array<i64: 256, 128>}, {pipeline_mode = #tpu.pipeline_mode<synchronous>, transform_indices = @transform_4, window_bounds = array<i64: 1, 128>}, {pipeline_mode = #tpu.pipeline_mode<synchronous>, transform_indices = @transform_5, window_bounds = array<i64: 128, 4>}, {pipeline_mode = #tpu.pipeline_mode<synchronous>, transform_indices = @transform_6, window_bounds = array<i64: 1, 1>}, {transform_indices = @transform_7, window_bounds = array<i64: 8, 4>}]} {
    %c0 = arith.constant 0 : index
    %c0_0 = arith.constant 0 : index
    %0 = vector.load %arg1[%c0, %c0_0] : memref<8x128xf32, #tpu.memory_space<vmem>>, vector<8x128xf32>
    %c0_1 = arith.constant 0 : index
    %c0_2 = arith.constant 0 : index
    %1 = vector.load %arg2[%c0_1, %c0_2] : memref<128x256xf32, #tpu.memory_space<vmem>>, vector<128x256xf32>
    %c0_3 = arith.constant 0 : index
    %c0_4 = arith.constant 0 : index
    %2 = vector.load %arg3[%c0_3, %c0_4] : memref<1x256xf32, #tpu.memory_space<vmem>>, vector<1x256xf32>
    %cst = arith.constant dense<0.000000e+00> : vector<8x256xf32>
    %3 = tpu.matmul %0, %1, %cst {dimension_numbers = #tpu.dot_dimension_numbers<[1], [0], [0], [1], [0, 0, 1, 1], [], []>} : vector<8x128xf32>, vector<128x256xf32>, vector<8x256xf32> -> vector<8x256xf32>
    %4 = vector.broadcast %2 : vector<1x256xf32> to vector<8x256xf32>
    %5 = arith.addf %3, %4 : vector<8x256xf32>
    %cst_5 = arith.constant 0.000000e+00 : f32
    %6 = vector.broadcast %cst_5 : f32 to vector<8x256xf32>
    %7 = arith.maximumf %5, %6 : vector<8x256xf32>
    %c0_6 = arith.constant 0 : index
    %c0_7 = arith.constant 0 : index
    %8 = vector.load %arg4[%c0_6, %c0_7] : memref<256x128xf32, #tpu.memory_space<vmem>>, vector<256x128xf32>
    %c0_8 = arith.constant 0 : index
    %c0_9 = arith.constant 0 : index
    %9 = vector.load %arg5[%c0_8, %c0_9] : memref<1x128xf32, #tpu.memory_space<vmem>>, vector<1x128xf32>
    %cst_10 = arith.constant dense<0.000000e+00> : vector<8x128xf32>
    %10 = tpu.matmul %7, %8, %cst_10 {dimension_numbers = #tpu.dot_dimension_numbers<[1], [0], [0], [1], [0, 0, 1, 1], [], []>} : vector<8x256xf32>, vector<256x128xf32>, vector<8x128xf32> -> vector<8x128xf32>
    %11 = vector.broadcast %9 : vector<1x128xf32> to vector<8x128xf32>
    %12 = arith.addf %10, %11 : vector<8x128xf32>
    %cst_11 = arith.constant 0.000000e+00 : f32
    %13 = vector.broadcast %cst_11 : f32 to vector<8x128xf32>
    %14 = arith.maximumf %12, %13 : vector<8x128xf32>
    %c0_12 = arith.constant 0 : index
    %c0_13 = arith.constant 0 : index
    %15 = vector.load %arg6[%c0_12, %c0_13] : memref<128x4xf32, #tpu.memory_space<vmem>>, vector<128x4xf32>
    %c0_14 = arith.constant 0 : index
    %c0_15 = arith.constant 0 : index
    %16 = vector.load %arg7[%c0_14, %c0_15] : memref<1x1xf32, #tpu.memory_space<vmem>>, vector<1x1xf32>
    %cst_16 = arith.constant dense<0.000000e+00> : vector<8x4xf32>
    %17 = tpu.matmul %14, %15, %cst_16 {dimension_numbers = #tpu.dot_dimension_numbers<[1], [0], [0], [1], [0, 0, 1, 1], [], []>} : vector<8x128xf32>, vector<128x4xf32>, vector<8x4xf32> -> vector<8x4xf32>
    %18 = vector.broadcast %16 : vector<1x1xf32> to vector<8x4xf32>
    %19 = arith.addf %17, %18 : vector<8x4xf32>
    %c0_17 = arith.constant 0 : index
    %c0_18 = arith.constant 0 : index
    %20 = vector.load %arg8[%c0_17, %c0_18] : memref<8x4xf32, #tpu.memory_space<vmem>>, vector<8x4xf32>
    tpu.vector_store %arg8[%c0_17, %c0_18], %19 {strides = array<i32>} : memref<8x4xf32, #tpu.memory_space<vmem>>, vector<8x4xf32>,
    return
  }
  func.func @transform_0(%arg0: i32) -> (i32, i32) {
    %c0_i32 = arith.constant 0 : i32
    %c0_i32_0 = arith.constant 0 : i32
    return %arg0, %c0_i32 : i32, i32
  }
  func.func @transform_1(%arg0: i32) -> (i32, i32) {
    %c0_i32 = arith.constant 0 : i32
    %c0_i32_0 = arith.constant 0 : i32
    %c0_i32_1 = arith.constant 0 : i32
    return %c0_i32, %c0_i32_0 : i32, i32
  }
  func.func @transform_2(%arg0: i32) -> (i32, i32) {
    %c0_i32 = arith.constant 0 : i32
    %c0_i32_0 = arith.constant 0 : i32
    %c0_i32_1 = arith.constant 0 : i32
    return %c0_i32, %c0_i32_0 : i32, i32
  }
  func.func @transform_3(%arg0: i32) -> (i32, i32) {
    %c0_i32 = arith.constant 0 : i32
    %c0_i32_0 = arith.constant 0 : i32
    %c0_i32_1 = arith.constant 0 : i32
    return %c0_i32, %c0_i32_0 : i32, i32
  }
  func.func @transform_4(%arg0: i32) -> (i32, i32) {
    %c0_i32 = arith.constant 0 : i32
    %c0_i32_0 = arith.constant 0 : i32
    %c0_i32_1 = arith.constant 0 : i32
    return %c0_i32, %c0_i32_0 : i32, i32
  }
  func.func @transform_5(%arg0: i32) -> (i32, i32) {
    %c0_i32 = arith.constant 0 : i32
    %c0_i32_0 = arith.constant 0 : i32
    %c0_i32_1 = arith.constant 0 : i32
    return %c0_i32, %c0_i32_0 : i32, i32
  }
  func.func @transform_6(%arg0: i32) -> (i32, i32) {
    %c0_i32 = arith.constant 0 : i32
    %c0_i32_0 = arith.constant 0 : i32
    %c0_i32_1 = arith.constant 0 : i32
    return %c0_i32, %c0_i32_0 : i32, i32
  }
  func.func @transform_7(%arg0: i32) -> (i32, i32) {
    %c0_i32 = arith.constant 0 : i32
    %c0_i32_0 = arith.constant 0 : i32
    return %arg0, %c0_i32 : i32, i32
  }
}

</mosaic_0001>

<llo_original>
// kernel: tpu_custom_call.1
$region0: #{tpu_custom_call.1}
  #allocation0 [shape = 'u32[]', space=smem, size = 0x4, offset = 0x4, fixed_abs, tag = 'smem constant byte address 0x4 - core index']
  #allocation1 [shape = 'u32[144,128]{1,0:T(1,128)}', space=vmem, size = 0x12000, scoped, tag = 'internal scratch']
  #allocation2 [shape = 'f32[1,1]{1,0:T(1,128)S(1)}', space=vmem, size = 0x200, scoped, tag = 'scoped memory for tpu_custom_call.1']
  %s0 = inlined_call_operand.vmem [shape: f32[8,128], index: 0, kind: input, shape index: {}]
  %s1 = inlined_call_operand.hbm [shape: f32[128,256], index: 1, kind: input, shape index: {}]
  %s2 = inlined_call_operand.vmem [shape: f32[1,256], index: 2, kind: input, shape index: {}]
  %s3 = inlined_call_operand.hbm [shape: f32[256,128], index: 3, kind: input, shape index: {}]
  %s4 = inlined_call_operand.vmem [shape: f32[1,128], index: 4, kind: input, shape index: {}]
  %s5 = inlined_call_operand.vmem [shape: f32[128,4], index: 5, kind: input, shape index: {}]
  %s6 = inlined_call_operand.<no memory space> [shape: f32[1,1], index: 6, kind: input, shape index: {}]
  %s7 = inlined_call_operand.vmem [shape: f32[8,4], index: 7, kind: output, shape index: {}]
  %s8 = sld [smem:[#allocation0]]
  $region46: #{tpu_custom_call.1} parent=0
    _
  %s10 = ssub.s32 1, %s8
  %s11 = scalar_select 0, %s10, %s8
  %v12 = vstv %s6
  %13 = vst [vmem:[#allocation2] sm:$0x1] %v12
  $region1: #{tpu_custom_call.1} parent=0
    #allocation3 [shape = 'u8[131072]{0}', space=vmem, size = 0x20000, scoped, tag = 'input window, operand 1, single buffered']
    #allocation4 [shape = 's32[1]{0}', space=sflag, size = 0x4, scoped, tag = 'scoped memory for tpu_custom_call.1']
    #allocation5 [shape = 'u8[131072]{0}', space=vmem, size = 0x20000, scoped, tag = 'input window, operand 3, single buffered']
    #allocation6 [shape = 's32[1]{0}', space=sflag, size = 0x4, scoped, tag = 'scoped memory for tpu_custom_call.1']
    %14 = vsyncpa [#allocation4], 0
    %15 = vsyncpa [#allocation6], 0
    // Predicated region
    $region2: #{tpu_custom_call.1} parent=1 // pred_check
      _
    $region3: #{tpu_custom_call.1} parent=1 // pred_check_branch
      %17 = sbr.rel (0) target = $region5
    $region4: #{tpu_custom_call.1} parent=1 // pred_region
      _
    $region5: #{tpu_custom_call.1} parent=1 // pred_fallthru
      _
    // Predicated region
    $region6: #{tpu_custom_call.1} parent=1 // pred_check
      _
    $region7: #{tpu_custom_call.1} parent=1 // pred_check_branch
      %19 = sbr.rel (0) target = $region9
    $region8: #{tpu_custom_call.1} parent=1 // pred_region
      %s21 = ssub.s32 4096, 4096
      %22 = vsyncadd [#allocation4], %s21
      %s23 = sshll.u32 [#allocation3], 4
      %s24 = int_to_ptr.vmem [resolvable:$true] %s23
      %29 = dma.hbm_to_vmem [thread:$0]  %s1, 4096, %s24, [#allocation4], 256, 256, 16
    $region9: #{tpu_custom_call.1} parent=1 // pred_fallthru
      _
    // Predicated region
    $region10: #{tpu_custom_call.1} parent=1 // pred_check
      _
    $region11: #{tpu_custom_call.1} parent=1 // pred_check_branch
      %31 = sbr.rel (0) target = $region13
    $region12: #{tpu_custom_call.1} parent=1 // pred_region
      _
    $region13: #{tpu_custom_call.1} parent=1 // pred_fallthru
      _
    // Predicated region
    $region14: #{tpu_custom_call.1} parent=1 // pred_check
      _
    $region15: #{tpu_custom_call.1} parent=1 // pred_check_branch
      %33 = sbr.rel (0) target = $region17
    $region16: #{tpu_custom_call.1} parent=1 // pred_region
      %s35 = ssub.s32 4096, 4096
      %36 = vsyncadd [#allocation6], %s35
      %s37 = sshll.u32 [#allocation5], 4
      %s38 = int_to_ptr.vmem [resolvable:$true] %s37
      %43 = dma.hbm_to_vmem [thread:$0]  %s3, 4096, %s38, [#allocation6], 128, 128, 8
    $region17: #{tpu_custom_call.1} parent=1 // pred_fallthru
      _
    // Predicated region
    $region18: #{tpu_custom_call.1} parent=1 // pred_check
      _
    $region19: #{tpu_custom_call.1} parent=1 // pred_check_branch
      %45 = sbr.rel (0) target = $region21
    $region20: #{tpu_custom_call.1} parent=1 // pred_region
      _
    $region21: #{tpu_custom_call.1} parent=1 // pred_fallthru
      _
    // Predicated region
    $region22: #{tpu_custom_call.1} parent=1 // pred_check
      _
    $region23: #{tpu_custom_call.1} parent=1 // pred_check_branch
      %47 = sbr.rel (0) target = $region25
    $region24: #{tpu_custom_call.1} parent=1 // pred_region
      _
    $region25: #{tpu_custom_call.1} parent=1 // pred_fallthru
      _
    // Predicated region
    $region26: #{tpu_custom_call.1} parent=1 // pred_check
      _
    $region27: #{tpu_custom_call.1} parent=1 // pred_check_branch
      %49 = sbr.rel (0) target = $region29
    $region28: #{tpu_custom_call.1} parent=1 // pred_region
      _
    $region29: #{tpu_custom_call.1} parent=1 // pred_fallthru
      _
    // Predicated region
    $region30: #{tpu_custom_call.1} parent=1 // pred_check
      _
    $region31: #{tpu_custom_call.1} parent=1 // pred_check_branch
      %51 = sbr.rel (0) target = $region33
    $region32: #{tpu_custom_call.1} parent=1 // pred_region
      %52 = dma.done [#allocation4], 4096
    $region33: #{tpu_custom_call.1} parent=1 // pred_fallthru
      _
    // Predicated region
    $region34: #{tpu_custom_call.1} parent=1 // pred_check
      _
    $region35: #{tpu_custom_call.1} parent=1 // pred_check_branch
      %54 = sbr.rel (0) target = $region37
    $region36: #{tpu_custom_call.1} parent=1 // pred_region
      %55 = dma.done [#allocation6], 4096
    $region37: #{tpu_custom_call.1} parent=1 // pred_fallthru
      _
    %v56 = vld [vmem:[%s0] sm:$0xff]
    %v57 = vld [vmem:[#allocation3] sm:$0xff]
    %v58 = vld [vmem:[#allocation3 + $0x8] sm:$0xff]
    %v59 = vld [vmem:[#allocation3 + $0x10] sm:$0xff]
    %v60 = vld [vmem:[#allocation3 + $0x18] sm:$0xff]
    %v61 = vld [vmem:[#allocation3 + $0x20] sm:$0xff]
    %v62 = vld [vmem:[#allocation3 + $0x28] sm:$0xff]
    %v63 = vld [vmem:[#allocation3 + $0x30] sm:$0xff]
    %v64 = vld [vmem:[#allocation3 + $0x38] sm:$0xff]
    %v65 = vld [vmem:[#allocation3 + $0x40] sm:$0xff]
    %v66 = vld [vmem:[#allocation3 + $0x48] sm:$0xff]
    %v67 = vld [vmem:[#allocation3 + $0x50] sm:$0xff]
    %v68 = vld [vmem:[#allocation3 + $0x58] sm:$0xff]
    %v69 = vld [vmem:[#allocation3 + $0x60] sm:$0xff]
    %v70 = vld [vmem:[#allocation3 + $0x68] sm:$0xff]
    %v71 = vld [vmem:[#allocation3 + $0x70] sm:$0xff]
    %v72 = vld [vmem:[#allocation3 + $0x78] sm:$0xff]
    %v73 = vld [vmem:[#allocation3 + $0x80] sm:$0xff]
    %v74 = vld [vmem:[#allocation3 + $0x88] sm:$0xff]
    %v75 = vld [vmem:[#allocation3 + $0x90] sm:$0xff]
    %v76 = vld [vmem:[#allocation3 + $0x98] sm:$0xff]
    %v77 = vld [vmem:[#allocation3 + $0xa0] sm:$0xff]
    %v78 = vld [vmem:[#allocation3 + $0xa8] sm:$0xff]
    %v79 = vld [vmem:[#allocation3 + $0xb0] sm:$0xff]
    %v80 = vld [vmem:[#allocation3 + $0xb8] sm:$0xff]
    %v81 = vld [vmem:[#allocation3 + $0xc0] sm:$0xff]
    %v82 = vld [vmem:[#allocation3 + $0xc8] sm:$0xff]
    %v83 = vld [vmem:[#allocation3 + $0xd0] sm:$0xff]
    %v84 = vld [vmem:[#allocation3 + $0xd8] sm:$0xff]
    %v85 = vld [vmem:[#allocation3 + $0xe0] sm:$0xff]
    %v86 = vld [vmem:[#allocation3 + $0xe8] sm:$0xff]
    %v87 = vld [vmem:[#allocation3 + $0xf0] sm:$0xff]
    %v88 = vld [vmem:[#allocation3 + $0xf8] sm:$0xff]
    %v89 = vld [vmem:[%s2] sm:$0x3]
    %v91 = vlaneseq
    %v92 = vshrl.u32 %v91, 7
    %v93 = vsub.s32 0, %v92
    %v94 = vrot.slane %v89, %v93
    %v95 = vlaneseq
    %v96 = vshrl.u32 %v95, 7
    %v97 = vsub.s32 1, %v96
    %v98 = vrot.slane %v89, %v97
    %101 = vmatprep.subr.mxu0 %v58
    %102 = vmatpush1.msra.mxu0 %v57
    %103 = vmatprep.subr.mxu0 %v60
    %104 = vmatpush1.msra.mxu0 %v59
    %105 = vmatprep.subr.mxu0 %v62
    %106 = vmatpush1.msra.mxu0 %v61
    %107 = vmatprep.subr.mxu0 %v64
    %108 = vmatpush1.msra.mxu0 %v63
    %109 = vmatprep.subr.mxu0 %v66
    %110 = vmatpush1.msra.mxu0 %v65
    %111 = vmatprep.subr.mxu0 %v68
    %112 = vmatpush1.msra.mxu0 %v67
    %113 = vmatprep.subr.mxu0 %v70
    %114 = vmatpush1.msra.mxu0 %v69
    %115 = vmatprep.subr.mxu0 %v72
    %116 = vmatpush1.msra.mxu0 %v71
    %117 = vmatprep.subr.mxu0 %v74
    %118 = vmatpush1.msra.mxu0 %v73
    %119 = vmatprep.subr.mxu0 %v76
    %120 = vmatpush1.msra.mxu0 %v75
    %121 = vmatprep.subr.mxu0 %v78
    %122 = vmatpush1.msra.mxu0 %v77
    %123 = vmatprep.subr.mxu0 %v80
    %124 = vmatpush1.msra.mxu0 %v79
    %125 = vmatprep.subr.mxu0 %v82
    %126 = vmatpush1.msra.mxu0 %v81
    %127 = vmatprep.subr.mxu0 %v84
    %128 = vmatpush1.msra.mxu0 %v83
    %129 = vmatprep.subr.mxu0 %v86
    %130 = vmatpush1.msra.mxu0 %v85
    %131 = vmatprep.subr.mxu0 %v88
    %132 = vmatpush1.msra.mxu0 %v87
    %133 = vmatprep.subr.mxu0 0.0
    %134 = vmatpush1.msra.mxu0 0.0
    %135 = vmatprep.subr.mxu0 0.0
    %136 = vmatpush1.msra.mxu0 0.0
    %137 = vmatprep.subr.mxu0 0.0
    %138 = vmatpush1.msra.mxu0 0.0
    %139 = vmatprep.subr.mxu0 0.0
    %140 = vmatpush1.msra.mxu0 0.0
    %141 = vmatprep.subr.mxu0 0.0
    %142 = vmatpush1.msra.mxu0 0.0
    %143 = vmatprep.subr.mxu0 0.0
    %144 = vmatpush1.msra.mxu0 0.0
    %145 = vmatprep.subr.mxu0 0.0
    %146 = vmatpush1.msra.mxu0 0.0
    %147 = vmatprep.subr.mxu0 0.0
    %148 = vmatpush1.msra.mxu0 0.0
    %149 = vmatprep.subr.mxu0 0.0
    %150 = vmatpush1.msra.mxu0 0.0
    %151 = vmatprep.subr.mxu0 0.0
    %152 = vmatpush1.msra.mxu0 0.0
    %153 = vmatprep.subr.mxu0 0.0
    %154 = vmatpush1.msra.mxu0 0.0
    %155 = vmatprep.subr.mxu0 0.0
    %156 = vmatpush1.msra.mxu0 0.0
    %157 = vmatprep.subr.mxu0 0.0
    %158 = vmatpush1.msra.mxu0 0.0
    %159 = vmatprep.subr.mxu0 0.0
    %160 = vmatpush1.msra.mxu0 0.0
    %161 = vmatprep.subr.mxu0 0.0
    %162 = vmatpush1.msra.mxu0 0.0
    %163 = vmatprep.subr.mxu0 0.0
    %164 = vmatpush1.msra.mxu0 0.0
    %165 = vmatprep.mubr.f32.mxu0 0.0
    %166 = vmatmul.mubr.f32.gmra.mrb[0].mxu0 %v56
    %v167 = vpop.f32.mrb[0].mxu0
    %v168 = vadd.f32 %v94, %v167
    %v169 = vpop.f32.mrb[0].mxu0
    %v170 = vadd.f32 %v98, %v169
    %171 = vdwg.mxu0
    %v172 = vmax.f32 %v168, 0.0
    %v173 = vmax.f32 %v170, 0.0
    %v174 = vld [vmem:[#allocation5] sm:$0xff]
    %v175 = vld [vmem:[#allocation5 + $0x8] sm:$0xff]
    %v176 = vld [vmem:[#allocation5 + $0x10] sm:$0xff]
    %v177 = vld [vmem:[#allocation5 + $0x18] sm:$0xff]
    %v178 = vld [vmem:[#allocation5 + $0x20] sm:$0xff]
    %v179 = vld [vmem:[#allocation5 + $0x28] sm:$0xff]
    %v180 = vld [vmem:[#allocation5 + $0x30] sm:$0xff]
    %v181 = vld [vmem:[#allocation5 + $0x38] sm:$0xff]
    %v182 = vld [vmem:[#allocation5 + $0x40] sm:$0xff]
    %v183 = vld [vmem:[#allocation5 + $0x48] sm:$0xff]
    %v184 = vld [vmem:[#allocation5 + $0x50] sm:$0xff]
    %v185 = vld [vmem:[#allocation5 + $0x58] sm:$0xff]
    %v186 = vld [vmem:[#allocation5 + $0x60] sm:$0xff]
    %v187 = vld [vmem:[#allocation5 + $0x68] sm:$0xff]
    %v188 = vld [vmem:[#allocation5 + $0x70] sm:$0xff]
    %v189 = vld [vmem:[#allocation5 + $0x78] sm:$0xff]
    %v190 = vld [vmem:[#allocation5 + $0x80] sm:$0xff]
    %v191 = vld [vmem:[#allocation5 + $0x88] sm:$0xff]
    %v192 = vld [vmem:[#allocation5 + $0x90] sm:$0xff]
    %v193 = vld [vmem:[#allocation5 + $0x98] sm:$0xff]
    %v194 = vld [vmem:[#allocation5 + $0xa0] sm:$0xff]
    %v195 = vld [vmem:[#allocation5 + $0xa8] sm:$0xff]
    %v196 = vld [vmem:[#allocation5 + $0xb0] sm:$0xff]
    %v197 = vld [vmem:[#allocation5 + $0xb8] sm:$0xff]
    %v198 = vld [vmem:[#allocation5 + $0xc0] sm:$0xff]
    %v199 = vld [vmem:[#allocation5 + $0xc8] sm:$0xff]
    %v200 = vld [vmem:[#allocation5 + $0xd0] sm:$0xff]
    %v201 = vld [vmem:[#allocation5 + $0xd8] sm:$0xff]
    %v202 = vld [vmem:[#allocation5 + $0xe0] sm:$0xff]
    %v203 = vld [vmem:[#allocation5 + $0xe8] sm:$0xff]
    %v204 = vld [vmem:[#allocation5 + $0xf0] sm:$0xff]
    %v205 = vld [vmem:[#allocation5 + $0xf8] sm:$0xff]
    %v206 = vld [vmem:[%s4] sm:$0x1]
    %v208 = vlaneseq
    %v209 = vshrl.u32 %v208, 7
    %v210 = vsub.s32 0, %v209
    %v211 = vrot.slane %v206, %v210
    %213 = vmatprep.subr.mxu0 0.0
    %214 = vmatpush1.msra.mxu0 %v174
    %215 = vmatprep.subr.mxu0 0.0
    %216 = vmatpush1.msra.mxu0 %v175
    %217 = vmatprep.subr.mxu0 0.0
    %218 = vmatpush1.msra.mxu0 %v176
    %219 = vmatprep.subr.mxu0 0.0
    %220 = vmatpush1.msra.mxu0 %v177
    %221 = vmatprep.subr.mxu0 0.0
    %222 = vmatpush1.msra.mxu0 %v178
    %223 = vmatprep.subr.mxu0 0.0
    %224 = vmatpush1.msra.mxu0 %v179
    %225 = vmatprep.subr.mxu0 0.0
    %226 = vmatpush1.msra.mxu0 %v180
    %227 = vmatprep.subr.mxu0 0.0
    %228 = vmatpush1.msra.mxu0 %v181
    %229 = vmatprep.subr.mxu0 0.0
    %230 = vmatpush1.msra.mxu0 %v182
    %231 = vmatprep.subr.mxu0 0.0
    %232 = vmatpush1.msra.mxu0 %v183
    %233 = vmatprep.subr.mxu0 0.0
    %234 = vmatpush1.msra.mxu0 %v184
    %235 = vmatprep.subr.mxu0 0.0
    %236 = vmatpush1.msra.mxu0 %v185
    %237 = vmatprep.subr.mxu0 0.0
    %238 = vmatpush1.msra.mxu0 %v186
    %239 = vmatprep.subr.mxu0 0.0
    %240 = vmatpush1.msra.mxu0 %v187
    %241 = vmatprep.subr.mxu0 0.0
    %242 = vmatpush1.msra.mxu0 %v188
    %243 = vmatprep.subr.mxu0 0.0
    %244 = vmatpush1.msra.mxu0 %v189
    %245 = vmatprep.subr.mxu0 0.0
    %246 = vmatpush1.msra.mxu0 %v190
    %247 = vmatprep.subr.mxu0 0.0
    %248 = vmatpush1.msra.mxu0 %v191
    %249 = vmatprep.subr.mxu0 0.0
    %250 = vmatpush1.msra.mxu0 %v192
    %251 = vmatprep.subr.mxu0 0.0
    %252 = vmatpush1.msra.mxu0 %v193
    %253 = vmatprep.subr.mxu0 0.0
    %254 = vmatpush1.msra.mxu0 %v194
    %255 = vmatprep.subr.mxu0 0.0
    %256 = vmatpush1.msra.mxu0 %v195
    %257 = vmatprep.subr.mxu0 0.0
    %258 = vmatpush1.msra.mxu0 %v196
    %259 = vmatprep.subr.mxu0 0.0
    %260 = vmatpush1.msra.mxu0 %v197
    %261 = vmatprep.subr.mxu0 0.0
    %262 = vmatpush1.msra.mxu0 %v198
    %263 = vmatprep.subr.mxu0 0.0
    %264 = vmatpush1.msra.mxu0 %v199
    %265 = vmatprep.subr.mxu0 0.0
    %266 = vmatpush1.msra.mxu0 %v200
    %267 = vmatprep.subr.mxu0 0.0
    %268 = vmatpush1.msra.mxu0 %v201
    %269 = vmatprep.subr.mxu0 0.0
    %270 = vmatpush1.msra.mxu0 %v202
    %271 = vmatprep.subr.mxu0 0.0
    %272 = vmatpush1.msra.mxu0 %v203
    %273 = vmatprep.subr.mxu0 0.0
    %274 = vmatpush1.msra.mxu0 %v204
    %275 = vmatprep.subr.mxu0 0.0
    %276 = vmatpush1.msra.mxu0 %v205
    %277 = vmatprep.mubr.f32.mxu0 %v173
    %278 = vmatmul.mubr.f32.gmra.mrb[0].mxu0 %v172
    %v279 = vpop.f32.mrb[0].mxu0
    %v280 = vadd.f32 %v211, %v279
    %v281 = vpop.f32.mrb[0].mxu0
    %282 = vdwg.mxu0
    %v283 = vmax.f32 %v280, 0.0
    %v284 = vld [vmem:[%s5] sm:$0xff]
    %v285 = vld [vmem:[%s5 + $0x8] sm:$0xff]
    %v286 = vld [vmem:[%s5 + $0x10] sm:$0xff]
    %v287 = vld [vmem:[%s5 + $0x18] sm:$0xff]
    %v288 = vld [vmem:[%s5 + $0x20] sm:$0xff]
    %v289 = vld [vmem:[%s5 + $0x28] sm:$0xff]
    %v290 = vld [vmem:[%s5 + $0x30] sm:$0xff]
    %v291 = vld [vmem:[%s5 + $0x38] sm:$0xff]
    %v292 = vld [vmem:[%s5 + $0x40] sm:$0xff]
    %v293 = vld [vmem:[%s5 + $0x48] sm:$0xff]
    %v294 = vld [vmem:[%s5 + $0x50] sm:$0xff]
    %v295 = vld [vmem:[%s5 + $0x58] sm:$0xff]
    %v296 = vld [vmem:[%s5 + $0x60] sm:$0xff]
    %v297 = vld [vmem:[%s5 + $0x68] sm:$0xff]
    %v298 = vld [vmem:[%s5 + $0x70] sm:$0xff]
    %v299 = vld [vmem:[%s5 + $0x78] sm:$0xff]
    %v300 = vld [vmem:[#allocation2] sm:$0x1]
    %v302 = vlaneseq
    %v303 = vshrl.u32 %v302, 7
    %v304 = vsub.s32 0, %v303
    %v305 = vrot.slane %v300, %v304
    %306 = vset.pattern.permute.xlu0 0
    %307 = vperm.xlu0 %306, %v305
    %v308 = vpop.permute.xlu0 %307
    %310 = vmatprep.subr.mxu0 0.0
    %311 = vmatpush1.msra.mxu0 %v284
    %312 = vmatprep.subr.mxu0 0.0
    %313 = vmatpush1.msra.mxu0 %v285
    %314 = vmatprep.subr.mxu0 0.0
    %315 = vmatpush1.msra.mxu0 %v286
    %316 = vmatprep.subr.mxu0 0.0
    %317 = vmatpush1.msra.mxu0 %v287
    %318 = vmatprep.subr.mxu0 0.0
    %319 = vmatpush1.msra.mxu0 %v288
    %320 = vmatprep.subr.mxu0 0.0
    %321 = vmatpush1.msra.mxu0 %v289
    %322 = vmatprep.subr.mxu0 0.0
    %323 = vmatpush1.msra.mxu0 %v290
    %324 = vmatprep.subr.mxu0 0.0
    %325 = vmatpush1.msra.mxu0 %v291
    %326 = vmatprep.subr.mxu0 0.0
    %327 = vmatpush1.msra.mxu0 %v292
    %328 = vmatprep.subr.mxu0 0.0
    %329 = vmatpush1.msra.mxu0 %v293
    %330 = vmatprep.subr.mxu0 0.0
    %331 = vmatpush1.msra.mxu0 %v294
    %332 = vmatprep.subr.mxu0 0.0
    %333 = vmatpush1.msra.mxu0 %v295
    %334 = vmatprep.subr.mxu0 0.0
    %335 = vmatpush1.msra.mxu0 %v296
    %336 = vmatprep.subr.mxu0 0.0
    %337 = vmatpush1.msra.mxu0 %v297
    %338 = vmatprep.subr.mxu0 0.0
    %339 = vmatpush1.msra.mxu0 %v298
    %340 = vmatprep.subr.mxu0 0.0
    %341 = vmatpush1.msra.mxu0 %v299
    %342 = vmatprep.subr.mxu0 0.0
    %343 = vmatpush1.msra.mxu0 0.0
    %344 = vmatprep.subr.mxu0 0.0
    %345 = vmatpush1.msra.mxu0 0.0
    %346 = vmatprep.subr.mxu0 0.0
    %347 = vmatpush1.msra.mxu0 0.0
    %348 = vmatprep.subr.mxu0 0.0
    %349 = vmatpush1.msra.mxu0 0.0
    %350 = vmatprep.subr.mxu0 0.0
    %351 = vmatpush1.msra.mxu0 0.0
    %352 = vmatprep.subr.mxu0 0.0
    %353 = vmatpush1.msra.mxu0 0.0
    %354 = vmatprep.subr.mxu0 0.0
    %355 = vmatpush1.msra.mxu0 0.0
    %356 = vmatprep.subr.mxu0 0.0
    %357 = vmatpush1.msra.mxu0 0.0
    %358 = vmatprep.subr.mxu0 0.0
    %359 = vmatpush1.msra.mxu0 0.0
    %360 = vmatprep.subr.mxu0 0.0
    %361 = vmatpush1.msra.mxu0 0.0
    %362 = vmatprep.subr.mxu0 0.0
    %363 = vmatpush1.msra.mxu0 0.0
    %364 = vmatprep.subr.mxu0 0.0
    %365 = vmatpush1.msra.mxu0 0.0
    %366 = vmatprep.subr.mxu0 0.0
    %367 = vmatpush1.msra.mxu0 0.0
    %368 = vmatprep.subr.mxu0 0.0
    %369 = vmatpush1.msra.mxu0 0.0
    %370 = vmatprep.subr.mxu0 0.0
    %371 = vmatpush1.msra.mxu0 0.0
    %372 = vmatprep.subr.mxu0 0.0
    %373 = vmatpush1.msra.mxu0 0.0
    %374 = vmatprep.mubr.f32.mxu0 0.0
    %375 = vmatmul.mubr.f32.gmra.mrb[0].mxu0 %v283
    %v376 = vpop.f32.mrb[0].mxu0
    %v377 = vadd.f32 %v308, %v376
    %v378 = vpop.f32.mrb[0].mxu0
    %379 = vdwg.mxu0
    %vm380 = vcmask 31744
    %381 = vst.msk [vmem:[%s7] sm:$0xff] %vm380, %v377
    // Predicated region
    $region38: #{tpu_custom_call.1} parent=1 // pred_check
      _
    $region39: #{tpu_custom_call.1} parent=1 // pred_check_branch
      %383 = sbr.rel (0) target = $region41
    $region40: #{tpu_custom_call.1} parent=1 // pred_region
      _
    $region41: #{tpu_custom_call.1} parent=1 // pred_fallthru
      _
    // Predicated region
    $region42: #{tpu_custom_call.1} parent=1 // pred_check
      _
    $region43: #{tpu_custom_call.1} parent=1 // pred_check_branch
      %385 = sbr.rel (0) target = $region45
    $region44: #{tpu_custom_call.1} parent=1 // pred_region
      _
    $region45: #{tpu_custom_call.1} parent=1 // pred_fallthru
      _
    %386 = vsyncpa [#allocation4], 1
    %387 = vsyncpa [#allocation6], 1

</llo_original>
